<compile_context>
chip_gen: v7x
topology: tpu7x:2x2x1
jax: 0.10.0
libtpu: 0.0.40
codegen_flags: <defaults>
</compile_context>

<pallas_src>
import jax
import jax.numpy as jnp
from jax.experimental import pallas as pl
from jax.experimental.pallas import tpu as pltpu

C_SE_IN = 32     # squeeze-excite input channels (x63)
C_MID = 120      # channels of x61 / output of conv2d22
C_OUT = 40       # output channels of conv2d23
H = W = 28
HW = H * W       # 784
BN_EPS = 1e-3

LANES = 128
C_IN_PAD = 128   # x61 channel axis padded 120 -> 128 (MXU K alignment)
HW_PAD = 896     # 7 * 128, lane-dense spatial axis

# Row offsets inside the packed parameter slab (all sublane offsets are x8).
ROW_X63 = 0                      # row 0, lanes 0:32   : x63 (raw, relu in kernel)
ROW_W1T = 8                      # rows 8:136          : w1^T zero-padded to (128,128)
ROW_B1 = ROW_W1T + LANES         # 136, lanes 0:120    : conv2d22 bias
ROW_W2 = ROW_B1 + 8              # rows 144:184        : conv2d23 weight (40,120) padded
ROW_GAMMA = ROW_W2 + C_OUT       # rows 184:224, lane 0: bn gamma
ROW_BETA = ROW_GAMMA + C_OUT     # rows 224:264, lane 0: bn beta
PACK_ROWS = ROW_BETA + C_OUT     # 264 (multiple of 8)


def fused_kernel(params_ref, x61_ref, out_ref):
    # ---- squeeze-excite branch: relu -> 1x1 conv (32->120, bias) -> hardsigmoid
    s = jnp.maximum(params_ref[ROW_X63:ROW_X63 + 1, :], 0.0)            # (1,128)
    w1t = params_ref[ROW_W1T:ROW_W1T + LANES, :]                        # (128,128)
    z = jnp.dot(s, w1t, preferred_element_type=jnp.float32)             # (1,128)
    z = z + params_ref[ROW_B1:ROW_B1 + 1, :]
    hs = jnp.clip(z + 3.0, 0.0, 6.0) * (1.0 / 6.0)                      # hardsigmoid

    # ---- fold per-channel SE scale into conv2d23 weight (no pass over x61)
    w2s = params_ref[ROW_W2:ROW_W2 + C_OUT, :] * hs                     # (40,128)

    # ---- 1x1 conv 120 -> 40 as one MXU matmul over the channel axis
    y = jnp.dot(w2s, x61_ref[...], preferred_element_type=jnp.float32)  # (40,896)

    # ---- BatchNorm2d(40), training mode: single-pass batch stats over N*H*W.
    # Padded rows/columns of x61 are zero so padded columns of y are zero and do
    # not perturb the sums; divide by the true element count (784).
    s1 = jnp.sum(y, axis=1, keepdims=True)                              # (40,1)
    s2 = jnp.sum(y * y, axis=1, keepdims=True)                          # (40,1)
    inv_n = 1.0 / HW
    mean = s1 * inv_n
    var = s2 * inv_n - mean * mean                                      # biased var
    gamma = params_ref[ROW_GAMMA:ROW_GAMMA + C_OUT, 0:1]                # (40,1)
    beta = params_ref[ROW_BETA:ROW_BETA + C_OUT, 0:1]                   # (40,1)
    scale = jax.lax.rsqrt(var + BN_EPS) * gamma
    shift = beta - mean * scale
    out_ref[...] = (y * scale + shift).astype(out_ref.dtype)


@jax.jit
def fused_forward(x63, x61, w1, b1, w2, gamma, beta):
    """x63: (1,32,1,1) f32, x61: (1,120,28,28) f32 -> (1,40,28,28) f32."""
    # ---- pack the six small tensors into one slab (one DMA instead of six)
    pack = jnp.zeros((PACK_ROWS, LANES), jnp.float32)
    pack = pack.at[ROW_X63, :C_SE_IN].set(x63.reshape(C_SE_IN))
    pack = pack.at[ROW_W1T:ROW_W1T + C_SE_IN, :C_MID].set(w1.T)          # (32,120)
    pack = pack.at[ROW_B1, :C_MID].set(b1)
    pack = pack.at[ROW_W2:ROW_W2 + C_OUT, :C_MID].set(w2)                # (40,120)
    pack = pack.at[ROW_GAMMA:ROW_GAMMA + C_OUT, 0].set(gamma)
    pack = pack.at[ROW_BETA:ROW_BETA + C_OUT, 0].set(beta)

    # ---- zero-pad x61 to a lane-dense (128, 896) tile
    x61_pad = jnp.zeros((C_IN_PAD, HW_PAD), jnp.float32)
    x61_pad = x61_pad.at[:C_MID, :HW].set(x61.reshape(C_MID, HW))

    vmem_spec = pl.BlockSpec(memory_space=pltpu.MemorySpace.VMEM)
    out_pad = pl.pallas_call(
        fused_kernel,
        out_shape=jax.ShapeDtypeStruct((C_OUT, HW_PAD), jnp.float32),
        in_specs=[vmem_spec, vmem_spec],
        out_specs=vmem_spec,
        cost_estimate=pl.CostEstimate(
            flops=2 * C_OUT * C_IN_PAD * HW_PAD + 2 * LANES * LANES,
            transcendentals=0,
            bytes_accessed=4 * (PACK_ROWS * LANES
                                + C_IN_PAD * HW_PAD
                                + C_OUT * HW_PAD),
        ),
    )(pack, x61_pad)

    return out_pad[:, :HW].reshape(1, C_OUT, H, W)


def reference_forward(x63, x61, w1, b1, w2, gamma, beta):
    """Pure-jnp reference of the same forward pass (for a sanity check)."""
    s = jnp.maximum(x63.reshape(C_SE_IN), 0.0)
    z = w1 @ s + b1                                       # (120,)
    hs = jnp.clip(z + 3.0, 0.0, 6.0) / 6.0
    x67 = x61.reshape(C_MID, HW) * hs[:, None]
    y = w2 @ x67                                          # (40, HW)
    mean = y.mean(axis=1, keepdims=True)
    var = ((y - mean) ** 2).mean(axis=1, keepdims=True)
    out = (y - mean) * jax.lax.rsqrt(var + BN_EPS) * gamma[:, None] + beta[:, None]
    return out.reshape(1, C_OUT, H, W)


if __name__ == "__main__":
    key = jax.random.PRNGKey(0)
    k1, k2, k3, k4, k5, k6, k7 = jax.random.split(key, 7)

    # inputs (match the module's shapes)
    x63 = jax.random.normal(k1, (1, C_SE_IN, 1, 1), dtype=jnp.float32)
    x61 = jax.random.normal(k2, (1, C_MID, H, W), dtype=jnp.float32)

    # deterministic synthetic parameters
    w1 = 0.1 * jax.random.normal(k3, (C_MID, C_SE_IN), dtype=jnp.float32)   # conv2d22 (1x1)
    b1 = 0.1 * jax.random.normal(k4, (C_MID,), dtype=jnp.float32)
    w2 = 0.1 * jax.random.normal(k5, (C_OUT, C_MID), dtype=jnp.float32)     # conv2d23 (1x1)
    gamma = 1.0 + 0.1 * jax.random.normal(k6, (C_OUT,), dtype=jnp.float32)  # bn weight
    beta = 0.1 * jax.random.normal(k7, (C_OUT,), dtype=jnp.float32)         # bn bias

    out = fused_forward(x63, x61, w1, b1, w2, gamma, beta)
    out = jax.block_until_ready(out)

    ref = reference_forward(x63, x61, w1, b1, w2, gamma, beta)
    assert out.shape == (1, C_OUT, H, W)
    assert jnp.allclose(out, ref, atol=2e-3, rtol=2e-3), "mismatch vs reference"

    print("KERNEL_OK")
</pallas_src>

<mosaic_0001>
module attributes {stable_mosaic.version = 11 : i64} {
  func.func @fused_kernel(%arg0: memref<264x128xf32, #tpu.memory_space<vmem>>, %arg1: memref<128x896xf32, #tpu.memory_space<vmem>>, %arg2: memref<40x896xf32, #tpu.memory_space<vmem>>) attributes {dimension_semantics = [], scalar_prefetch = 0 : i64, scratch_operands = 0 : i64, tpu.core_type = #tpu.core_type<tc>} {
    %c0 = arith.constant 0 : index
    %c0_0 = arith.constant 0 : index
    %0 = vector.load %arg0[%c0, %c0_0] : memref<264x128xf32, #tpu.memory_space<vmem>>, vector<1x128xf32>
    %cst = arith.constant 0.000000e+00 : f32
    %1 = vector.broadcast %cst : f32 to vector<1x128xf32>
    %2 = arith.maximumf %0, %1 : vector<1x128xf32>
    %c8 = arith.constant 8 : index
    %c0_1 = arith.constant 0 : index
    %3 = vector.load %arg0[%c8, %c0_1] : memref<264x128xf32, #tpu.memory_space<vmem>>, vector<128x128xf32>
    %cst_2 = arith.constant dense<0.000000e+00> : vector<1x128xf32>
    %4 = tpu.matmul %2, %3, %cst_2 {dimension_numbers = #tpu.dot_dimension_numbers<[1], [0], [0], [1], [0, 0, 1, 1], [], []>} : vector<1x128xf32>, vector<128x128xf32>, vector<1x128xf32> -> vector<1x128xf32>
    %c136 = arith.constant 136 : index
    %c0_3 = arith.constant 0 : index
    %5 = vector.load %arg0[%c136, %c0_3] : memref<264x128xf32, #tpu.memory_space<vmem>>, vector<1x128xf32>
    %6 = arith.addf %4, %5 : vector<1x128xf32>
    %cst_4 = arith.constant 3.000000e+00 : f32
    %7 = vector.broadcast %cst_4 : f32 to vector<1x128xf32>
    %8 = arith.addf %6, %7 : vector<1x128xf32>
    %cst_5 = arith.constant 0.000000e+00 : f32
    %cst_6 = arith.constant 6.000000e+00 : f32
    %9 = vector.broadcast %cst_5 : f32 to vector<1x128xf32>
    %10 = arith.maximumf %9, %8 : vector<1x128xf32>
    %11 = vector.broadcast %cst_6 : f32 to vector<1x128xf32>
    %12 = arith.minimumf %11, %10 : vector<1x128xf32>
    %cst_7 = arith.constant 0.166666672 : f32
    %13 = vector.broadcast %cst_7 : f32 to vector<1x128xf32>
    %14 = arith.mulf %12, %13 : vector<1x128xf32>
    %c144 = arith.constant 144 : index
    %c0_8 = arith.constant 0 : index
    %15 = vector.load %arg0[%c144, %c0_8] : memref<264x128xf32, #tpu.memory_space<vmem>>, vector<40x128xf32>
    %16 = vector.broadcast %14 : vector<1x128xf32> to vector<40x128xf32>
    %17 = arith.mulf %15, %16 : vector<40x128xf32>
    %c0_9 = arith.constant 0 : index
    %c0_10 = arith.constant 0 : index
    %18 = vector.load %arg1[%c0_9, %c0_10] : memref<128x896xf32, #tpu.memory_space<vmem>>, vector<128x896xf32>
    %cst_11 = arith.constant dense<0.000000e+00> : vector<40x896xf32>
    %19 = tpu.matmul %17, %18, %cst_11 {dimension_numbers = #tpu.dot_dimension_numbers<[1], [0], [0], [1], [0, 0, 1, 1], [], []>} : vector<40x128xf32>, vector<128x896xf32>, vector<40x896xf32> -> vector<40x896xf32>
    %cst_12 = arith.constant dense<0.000000e+00> : vector<40xf32>
    %20 = vector.multi_reduction <add>, %19, %cst_12 [1] : vector<40x896xf32> to vector<40xf32>
    %21 = vector.shape_cast %20 : vector<40xf32> to vector<40x1xf32>
    %22 = arith.mulf %19, %19 : vector<40x896xf32>
    %cst_13 = arith.constant dense<0.000000e+00> : vector<40xf32>
    %23 = vector.multi_reduction <add>, %22, %cst_13 [1] : vector<40x896xf32> to vector<40xf32>
    %24 = vector.shape_cast %23 : vector<40xf32> to vector<40x1xf32>
    %cst_14 = arith.constant 0.00127551018 : f32
    %25 = vector.broadcast %cst_14 : f32 to vector<40x1xf32>
    %26 = arith.mulf %21, %25 : vector<40x1xf32>
    %cst_15 = arith.constant 0.00127551018 : f32
    %27 = vector.broadcast %cst_15 : f32 to vector<40x1xf32>
    %28 = arith.mulf %24, %27 : vector<40x1xf32>
    %29 = arith.mulf %26, %26 : vector<40x1xf32>
    %30 = arith.subf %28, %29 : vector<40x1xf32>
    %c184 = arith.constant 184 : index
    %c0_16 = arith.constant 0 : index
    %31 = vector.load %arg0[%c184, %c0_16] : memref<264x128xf32, #tpu.memory_space<vmem>>, vector<40x1xf32>
    %c224 = arith.constant 224 : index
    %c0_17 = arith.constant 0 : index
    %32 = vector.load %arg0[%c224, %c0_17] : memref<264x128xf32, #tpu.memory_space<vmem>>, vector<40x1xf32>
    %cst_18 = arith.constant 1.000000e-03 : f32
    %33 = vector.broadcast %cst_18 : f32 to vector<40x1xf32>
    %34 = arith.addf %30, %33 : vector<40x1xf32>
    %35 = math.rsqrt %34 : vector<40x1xf32>
    %36 = arith.mulf %35, %31 : vector<40x1xf32>
    %37 = arith.mulf %26, %36 : vector<40x1xf32>
    %38 = arith.subf %32, %37 : vector<40x1xf32>
    %39 = vector.broadcast %36 : vector<40x1xf32> to vector<40x896xf32>
    %40 = arith.mulf %19, %39 : vector<40x896xf32>
    %41 = vector.broadcast %38 : vector<40x1xf32> to vector<40x896xf32>
    %42 = arith.addf %40, %41 : vector<40x896xf32>
    %c0_19 = arith.constant 0 : index
    %c0_20 = arith.constant 0 : index
    %43 = vector.load %arg2[%c0_19, %c0_20] : memref<40x896xf32, #tpu.memory_space<vmem>>, vector<40x896xf32>
    tpu.vector_store %arg2[%c0_19, %c0_20], %42 {strides = array<i32>} : memref<40x896xf32, #tpu.memory_space<vmem>>, vector<40x896xf32>,
    return
  }
}

</mosaic_0001>

<llo_original>
// kernel: fused_forward.1
$region0: #{fused_forward.1}
  #allocation0 [shape = 'u32[]', space=smem, size = 0x4, offset = 0x4, fixed_abs, tag = 'smem constant byte address 0x4 - core index']
  #allocation1 [shape = 'u32[144,128]{1,0:T(1,128)}', space=vmem, size = 0x12000, scoped, tag = 'internal scratch']
  %s0 = inlined_call_operand.vmem [shape: f32[264,128], index: 0, kind: input, shape index: {}]
  %s1 = inlined_call_operand.vmem [shape: f32[128,896], index: 1, kind: input, shape index: {}]
  %s2 = inlined_call_operand.vmem [shape: f32[40,896], index: 2, kind: output, shape index: {}]
  %s3 = sld [smem:[#allocation0]]
  $region18: #{fused_forward.1} parent=0
    _
  %s5 = ssub.s32 1, %s3
  %s6 = scalar_select 0, %s5, %s3
  // Predicated region
  $region2: #{fused_forward.1} parent=0 // pred_check
    _
  $region3: #{fused_forward.1} parent=0 // pred_check_branch
    %8 = sbr.rel (0) target = $region5
  $region4: #{fused_forward.1} parent=0 // pred_region
    _
  $region5: #{fused_forward.1} parent=0 // pred_fallthru
    _
  // Predicated region
  $region6: #{fused_forward.1} parent=0 // pred_check
    _
  $region7: #{fused_forward.1} parent=0 // pred_check_branch
    %10 = sbr.rel (0) target = $region9
  $region8: #{fused_forward.1} parent=0 // pred_region
    _
  $region9: #{fused_forward.1} parent=0 // pred_fallthru
    _
  %v11 = vld [vmem:[%s0] sm:$0x1]
  %v12 = vmax.f32 %v11, 0.0
  %v13 = vld [vmem:[%s0 + $0x8] sm:$0xff]
  %v14 = vld [vmem:[%s0 + $0x10] sm:$0xff]
  %v15 = vld [vmem:[%s0 + $0x18] sm:$0xff]
  %v16 = vld [vmem:[%s0 + $0x20] sm:$0xff]
  %v17 = vld [vmem:[%s0 + $0x28] sm:$0xff]
  %v18 = vld [vmem:[%s0 + $0x30] sm:$0xff]
  %v19 = vld [vmem:[%s0 + $0x38] sm:$0xff]
  %v20 = vld [vmem:[%s0 + $0x40] sm:$0xff]
  %v21 = vld [vmem:[%s0 + $0x48] sm:$0xff]
  %v22 = vld [vmem:[%s0 + $0x50] sm:$0xff]
  %v23 = vld [vmem:[%s0 + $0x58] sm:$0xff]
  %v24 = vld [vmem:[%s0 + $0x60] sm:$0xff]
  %v25 = vld [vmem:[%s0 + $0x68] sm:$0xff]
  %v26 = vld [vmem:[%s0 + $0x70] sm:$0xff]
  %v27 = vld [vmem:[%s0 + $0x78] sm:$0xff]
  %v28 = vld [vmem:[%s0 + $0x80] sm:$0xff]
  %v29 = vld [vmem:[%s0 + $0x88] sm:$0x1]
  %30 = vmatprep.subr.mxu0 0.0
  %31 = vmatpush1.msra.mxu0 %v13
  %32 = vmatprep.subr.mxu0 0.0
  %33 = vmatpush1.msra.mxu0 %v14
  %34 = vmatprep.subr.mxu0 0.0
  %35 = vmatpush1.msra.mxu0 %v15
  %36 = vmatprep.subr.mxu0 0.0
  %37 = vmatpush1.msra.mxu0 %v16
  %38 = vmatprep.subr.mxu0 0.0
  %39 = vmatpush1.msra.mxu0 %v17
  %40 = vmatprep.subr.mxu0 0.0
  %41 = vmatpush1.msra.mxu0 %v18
  %42 = vmatprep.subr.mxu0 0.0
  %43 = vmatpush1.msra.mxu0 %v19
  %44 = vmatprep.subr.mxu0 0.0
  %45 = vmatpush1.msra.mxu0 %v20
  %46 = vmatprep.subr.mxu0 0.0
  %47 = vmatpush1.msra.mxu0 %v21
  %48 = vmatprep.subr.mxu0 0.0
  %49 = vmatpush1.msra.mxu0 %v22
  %50 = vmatprep.subr.mxu0 0.0
  %51 = vmatpush1.msra.mxu0 %v23
  %52 = vmatprep.subr.mxu0 0.0
  %53 = vmatpush1.msra.mxu0 %v24
  %54 = vmatprep.subr.mxu0 0.0
  %55 = vmatpush1.msra.mxu0 %v25
  %56 = vmatprep.subr.mxu0 0.0
  %57 = vmatpush1.msra.mxu0 %v26
  %58 = vmatprep.subr.mxu0 0.0
  %59 = vmatpush1.msra.mxu0 %v27
  %60 = vmatprep.subr.mxu0 0.0
  %61 = vmatpush1.msra.mxu0 %v28
  %62 = vmatprep.subr.mxu0 0.0
  %63 = vmatpush1.msra.mxu0 0.0
  %64 = vmatprep.subr.mxu0 0.0
  %65 = vmatpush1.msra.mxu0 0.0
  %66 = vmatprep.subr.mxu0 0.0
  %67 = vmatpush1.msra.mxu0 0.0
  %68 = vmatprep.subr.mxu0 0.0
  %69 = vmatpush1.msra.mxu0 0.0
  %70 = vmatprep.subr.mxu0 0.0
  %71 = vmatpush1.msra.mxu0 0.0
  %72 = vmatprep.subr.mxu0 0.0
  %73 = vmatpush1.msra.mxu0 0.0
  %74 = vmatprep.subr.mxu0 0.0
  %75 = vmatpush1.msra.mxu0 0.0
  %76 = vmatprep.subr.mxu0 0.0
  %77 = vmatpush1.msra.mxu0 0.0
  %78 = vmatprep.subr.mxu0 0.0
  %79 = vmatpush1.msra.mxu0 0.0
  %80 = vmatprep.subr.mxu0 0.0
  %81 = vmatpush1.msra.mxu0 0.0
  %82 = vmatprep.subr.mxu0 0.0
  %83 = vmatpush1.msra.mxu0 0.0
  %84 = vmatprep.subr.mxu0 0.0
  %85 = vmatpush1.msra.mxu0 0.0
  %86 = vmatprep.subr.mxu0 0.0
  %87 = vmatpush1.msra.mxu0 0.0
  %88 = vmatprep.subr.mxu0 0.0
  %89 = vmatpush1.msra.mxu0 0.0
  %90 = vmatprep.subr.mxu0 0.0
  %91 = vmatpush1.msra.mxu0 0.0
  %92 = vmatprep.subr.mxu0 0.0
  %93 = vmatpush1.msra.mxu0 0.0
  %94 = vmatprep.mubr.f32.mxu0 0.0
  %95 = vmatmul.mubr.f32.gmra.mrb[0].mxu0 %v12
  %v96 = vpop.f32.mrb[0].mxu0
  %v97 = vadd.f32 %v29, %v96
  %v98 = vpop.f32.mrb[0].mxu0
  %99 = vdwg.mxu0
  %v100 = vadd.f32 %v97, 3.0
  %v101 = vmax.f32 %v100, 0.0
  %v102 = vmin.f32 %v101, 6.0
  %v103 = vmul.f32 %v102, 0.16666667
  %v104 = vld [vmem:[%s0 + $0x90] sm:$0xff]
  %v105 = vld [vmem:[%s0 + $0x98] sm:$0xff]
  %v106 = vld [vmem:[%s0 + $0xa0] sm:$0xff]
  %v107 = vld [vmem:[%s0 + $0xa8] sm:$0xff]
  %v108 = vld [vmem:[%s0 + $0xb0] sm:$0xff]
  %v109 = vlaneseq
  %v110 = vshrl.u32 %v109, 7
  %v111 = vsub.s32 0, %v110
  %v112 = vrot.slane %v103, %v111
  %v113 = vmul.f32 %v104, %v112
  %v114 = vmul.f32 %v105, %v112
  %v115 = vmul.f32 %v106, %v112
  %v116 = vmul.f32 %v107, %v112
  %v117 = vmul.f32 %v108, %v112
  %v118 = vld [vmem:[%s1] sm:$0xff]
  %v119 = vld [vmem:[%s1 + $0x8] sm:$0xff]
  %v120 = vld [vmem:[%s1 + $0x10] sm:$0xff]
  %v121 = vld [vmem:[%s1 + $0x18] sm:$0xff]
  %v122 = vld [vmem:[%s1 + $0x20] sm:$0xff]
  %v123 = vld [vmem:[%s1 + $0x28] sm:$0xff]
  %v124 = vld [vmem:[%s1 + $0x30] sm:$0xff]
  %v125 = vld [vmem:[%s1 + $0x38] sm:$0xff]
  %v126 = vld [vmem:[%s1 + $0x40] sm:$0xff]
  %v127 = vld [vmem:[%s1 + $0x48] sm:$0xff]
  %v128 = vld [vmem:[%s1 + $0x50] sm:$0xff]
  %v129 = vld [vmem:[%s1 + $0x58] sm:$0xff]
  %v130 = vld [vmem:[%s1 + $0x60] sm:$0xff]
  %v131 = vld [vmem:[%s1 + $0x68] sm:$0xff]
  %v132 = vld [vmem:[%s1 + $0x70] sm:$0xff]
  %v133 = vld [vmem:[%s1 + $0x78] sm:$0xff]
  %v134 = vld [vmem:[%s1 + $0x80] sm:$0xff]
  %v135 = vld [vmem:[%s1 + $0x88] sm:$0xff]
  %v136 = vld [vmem:[%s1 + $0x90] sm:$0xff]
  %v137 = vld [vmem:[%s1 + $0x98] sm:$0xff]
  %v138 = vld [vmem:[%s1 + $0xa0] sm:$0xff]
  %v139 = vld [vmem:[%s1 + $0xa8] sm:$0xff]
  %v140 = vld [vmem:[%s1 + $0xb0] sm:$0xff]
  %v141 = vld [vmem:[%s1 + $0xb8] sm:$0xff]
  %v142 = vld [vmem:[%s1 + $0xc0] sm:$0xff]
  %v143 = vld [vmem:[%s1 + $0xc8] sm:$0xff]
  %v144 = vld [vmem:[%s1 + $0xd0] sm:$0xff]
  %v145 = vld [vmem:[%s1 + $0xd8] sm:$0xff]
  %v146 = vld [vmem:[%s1 + $0xe0] sm:$0xff]
  %v147 = vld [vmem:[%s1 + $0xe8] sm:$0xff]
  %v148 = vld [vmem:[%s1 + $0xf0] sm:$0xff]
  %v149 = vld [vmem:[%s1 + $0xf8] sm:$0xff]
  %v150 = vld [vmem:[%s1 + $0x100] sm:$0xff]
  %v151 = vld [vmem:[%s1 + $0x108] sm:$0xff]
  %v152 = vld [vmem:[%s1 + $0x110] sm:$0xff]
  %v153 = vld [vmem:[%s1 + $0x118] sm:$0xff]
  %v154 = vld [vmem:[%s1 + $0x120] sm:$0xff]
  %v155 = vld [vmem:[%s1 + $0x128] sm:$0xff]
  %v156 = vld [vmem:[%s1 + $0x130] sm:$0xff]
  %v157 = vld [vmem:[%s1 + $0x138] sm:$0xff]
  %v158 = vld [vmem:[%s1 + $0x140] sm:$0xff]
  %v159 = vld [vmem:[%s1 + $0x148] sm:$0xff]
  %v160 = vld [vmem:[%s1 + $0x150] sm:$0xff]
  %v161 = vld [vmem:[%s1 + $0x158] sm:$0xff]
  %v162 = vld [vmem:[%s1 + $0x160] sm:$0xff]
  %v163 = vld [vmem:[%s1 + $0x168] sm:$0xff]
  %v164 = vld [vmem:[%s1 + $0x170] sm:$0xff]
  %v165 = vld [vmem:[%s1 + $0x178] sm:$0xff]
  %v166 = vld [vmem:[%s1 + $0x180] sm:$0xff]
  %v167 = vld [vmem:[%s1 + $0x188] sm:$0xff]
  %v168 = vld [vmem:[%s1 + $0x190] sm:$0xff]
  %v169 = vld [vmem:[%s1 + $0x198] sm:$0xff]
  %v170 = vld [vmem:[%s1 + $0x1a0] sm:$0xff]
  %v171 = vld [vmem:[%s1 + $0x1a8] sm:$0xff]
  %v172 = vld [vmem:[%s1 + $0x1b0] sm:$0xff]
  %v173 = vld [vmem:[%s1 + $0x1b8] sm:$0xff]
  %v174 = vld [vmem:[%s1 + $0x1c0] sm:$0xff]
  %v175 = vld [vmem:[%s1 + $0x1c8] sm:$0xff]
  %v176 = vld [vmem:[%s1 + $0x1d0] sm:$0xff]
  %v177 = vld [vmem:[%s1 + $0x1d8] sm:$0xff]
  %v178 = vld [vmem:[%s1 + $0x1e0] sm:$0xff]
  %v179 = vld [vmem:[%s1 + $0x1e8] sm:$0xff]
  %v180 = vld [vmem:[%s1 + $0x1f0] sm:$0xff]
  %v181 = vld [vmem:[%s1 + $0x1f8] sm:$0xff]
  %v182 = vld [vmem:[%s1 + $0x200] sm:$0xff]
  %v183 = vld [vmem:[%s1 + $0x208] sm:$0xff]
  %v184 = vld [vmem:[%s1 + $0x210] sm:$0xff]
  %v185 = vld [vmem:[%s1 + $0x218] sm:$0xff]
  %v186 = vld [vmem:[%s1 + $0x220] sm:$0xff]
  %v187 = vld [vmem:[%s1 + $0x228] sm:$0xff]
  %v188 = vld [vmem:[%s1 + $0x230] sm:$0xff]
  %v189 = vld [vmem:[%s1 + $0x238] sm:$0xff]
  %v190 = vld [vmem:[%s1 + $0x240] sm:$0xff]
  %v191 = vld [vmem:[%s1 + $0x248] sm:$0xff]
  %v192 = vld [vmem:[%s1 + $0x250] sm:$0xff]
  %v193 = vld [vmem:[%s1 + $0x258] sm:$0xff]
  %v194 = vld [vmem:[%s1 + $0x260] sm:$0xff]
  %v195 = vld [vmem:[%s1 + $0x268] sm:$0xff]
  %v196 = vld [vmem:[%s1 + $0x270] sm:$0xff]
  %v197 = vld [vmem:[%s1 + $0x278] sm:$0xff]
  %v198 = vld [vmem:[%s1 + $0x280] sm:$0xff]
  %v199 = vld [vmem:[%s1 + $0x288] sm:$0xff]
  %v200 = vld [vmem:[%s1 + $0x290] sm:$0xff]
  %v201 = vld [vmem:[%s1 + $0x298] sm:$0xff]
  %v202 = vld [vmem:[%s1 + $0x2a0] sm:$0xff]
  %v203 = vld [vmem:[%s1 + $0x2a8] sm:$0xff]
  %v204 = vld [vmem:[%s1 + $0x2b0] sm:$0xff]
  %v205 = vld [vmem:[%s1 + $0x2b8] sm:$0xff]
  %v206 = vld [vmem:[%s1 + $0x2c0] sm:$0xff]
  %v207 = vld [vmem:[%s1 + $0x2c8] sm:$0xff]
  %v208 = vld [vmem:[%s1 + $0x2d0] sm:$0xff]
  %v209 = vld [vmem:[%s1 + $0x2d8] sm:$0xff]
  %v210 = vld [vmem:[%s1 + $0x2e0] sm:$0xff]
  %v211 = vld [vmem:[%s1 + $0x2e8] sm:$0xff]
  %v212 = vld [vmem:[%s1 + $0x2f0] sm:$0xff]
  %v213 = vld [vmem:[%s1 + $0x2f8] sm:$0xff]
  %v214 = vld [vmem:[%s1 + $0x300] sm:$0xff]
  %v215 = vld [vmem:[%s1 + $0x308] sm:$0xff]
  %v216 = vld [vmem:[%s1 + $0x310] sm:$0xff]
  %v217 = vld [vmem:[%s1 + $0x318] sm:$0xff]
  %v218 = vld [vmem:[%s1 + $0x320] sm:$0xff]
  %v219 = vld [vmem:[%s1 + $0x328] sm:$0xff]
  %v220 = vld [vmem:[%s1 + $0x330] sm:$0xff]
  %v221 = vld [vmem:[%s1 + $0x338] sm:$0xff]
  %v222 = vld [vmem:[%s1 + $0x340] sm:$0xff]
  %v223 = vld [vmem:[%s1 + $0x348] sm:$0xff]
  %v224 = vld [vmem:[%s1 + $0x350] sm:$0xff]
  %v225 = vld [vmem:[%s1 + $0x358] sm:$0xff]
  %v226 = vld [vmem:[%s1 + $0x360] sm:$0xff]
  %v227 = vld [vmem:[%s1 + $0x368] sm:$0xff]
  %v228 = vld [vmem:[%s1 + $0x370] sm:$0xff]
  %v229 = vld [vmem:[%s1 + $0x378] sm:$0xff]
  %230 = vmatprep.subr.mxu0 %v119
  %231 = vmatpush1.msra.mxu0 %v118
  %232 = vmatprep.subr.mxu0 %v126
  %233 = vmatpush1.msra.mxu0 %v125
  %234 = vmatprep.subr.mxu0 %v133
  %235 = vmatpush1.msra.mxu0 %v132
  %236 = vmatprep.subr.mxu0 %v140
  %237 = vmatpush1.msra.mxu0 %v139
  %238 = vmatprep.subr.mxu0 %v147
  %239 = vmatpush1.msra.mxu0 %v146
  %240 = vmatprep.subr.mxu0 %v154
  %241 = vmatpush1.msra.mxu0 %v153
  %242 = vmatprep.subr.mxu0 %v161
  %243 = vmatpush1.msra.mxu0 %v160
  %244 = vmatprep.subr.mxu0 %v168
  %245 = vmatpush1.msra.mxu0 %v167
  %246 = vmatprep.subr.mxu0 %v175
  %247 = vmatpush1.msra.mxu0 %v174
  %248 = vmatprep.subr.mxu0 %v182
  %249 = vmatpush1.msra.mxu0 %v181
  %250 = vmatprep.subr.mxu0 %v189
  %251 = vmatpush1.msra.mxu0 %v188
  %252 = vmatprep.subr.mxu0 %v196
  %253 = vmatpush1.msra.mxu0 %v195
  %254 = vmatprep.subr.mxu0 %v203
  %255 = vmatpush1.msra.mxu0 %v202
  %256 = vmatprep.subr.mxu0 %v210
  %257 = vmatpush1.msra.mxu0 %v209
  %258 = vmatprep.subr.mxu0 %v217
  %259 = vmatpush1.msra.mxu0 %v216
  %260 = vmatprep.subr.mxu0 %v224
  %261 = vmatpush1.msra.mxu0 %v223
  %262 = vmatprep.subr.mxu0 0.0
  %263 = vmatpush1.msra.mxu0 0.0
  %264 = vmatprep.subr.mxu0 0.0
  %265 = vmatpush1.msra.mxu0 0.0
  %266 = vmatprep.subr.mxu0 0.0
  %267 = vmatpush1.msra.mxu0 0.0
  %268 = vmatprep.subr.mxu0 0.0
  %269 = vmatpush1.msra.mxu0 0.0
  %270 = vmatprep.subr.mxu0 0.0
  %271 = vmatpush1.msra.mxu0 0.0
  %272 = vmatprep.subr.mxu0 0.0
  %273 = vmatpush1.msra.mxu0 0.0
  %274 = vmatprep.subr.mxu0 0.0
  %275 = vmatpush1.msra.mxu0 0.0
  %276 = vmatprep.subr.mxu0 0.0
  %277 = vmatpush1.msra.mxu0 0.0
  %278 = vmatprep.subr.mxu0 0.0
  %279 = vmatpush1.msra.mxu0 0.0
  %280 = vmatprep.subr.mxu0 0.0
  %281 = vmatpush1.msra.mxu0 0.0
  %282 = vmatprep.subr.mxu0 0.0
  %283 = vmatpush1.msra.mxu0 0.0
  %284 = vmatprep.subr.mxu0 0.0
  %285 = vmatpush1.msra.mxu0 0.0
  %286 = vmatprep.subr.mxu0 0.0
  %287 = vmatpush1.msra.mxu0 0.0
  %288 = vmatprep.subr.mxu0 0.0
  %289 = vmatpush1.msra.mxu0 0.0
  %290 = vmatprep.subr.mxu0 0.0
  %291 = vmatpush1.msra.mxu0 0.0
  %292 = vmatprep.subr.mxu0 0.0
  %293 = vmatpush1.msra.mxu0 0.0
  %294 = vmatprep.mubr.f32.mxu0 0.0
  %295 = vmatmul.mubr.f32.gmra.mrb[0].mxu0 %v113
  %v296 = vpop.f32.mrb[0].mxu0
  %v297 = vadd.f32 0.0, %v296
  %v298 = vpop.f32.mrb[0].mxu0
  %v299 = vadd.f32 0.0, %v298
  %300 = vmatprep.mubr.f32.mxu0 0.0
  %301 = vmatmul.mubr.f32.gmra.mrb[0].mxu0 %v114
  %v302 = vpop.f32.mrb[0].mxu0
  %v303 = vadd.f32 0.0, %v302
  %v304 = vpop.f32.mrb[0].mxu0
  %v305 = vadd.f32 0.0, %v304
  %306 = vmatprep.mubr.f32.mxu0 0.0
  %307 = vmatmul.mubr.f32.gmra.mrb[0].mxu0 %v115
  %v308 = vpop.f32.mrb[0].mxu0
  %v309 = vadd.f32 0.0, %v308
  %v310 = vpop.f32.mrb[0].mxu0
  %v311 = vadd.f32 0.0, %v310
  %312 = vmatprep.mubr.f32.mxu0 0.0
  %313 = vmatmul.mubr.f32.gmra.mrb[0].mxu0 %v116
  %v314 = vpop.f32.mrb[0].mxu0
  %v315 = vadd.f32 0.0, %v314
  %v316 = vpop.f32.mrb[0].mxu0
  %v317 = vadd.f32 0.0, %v316
  %318 = vmatprep.mubr.f32.mxu0 0.0
  %319 = vmatmul.mubr.f32.gmra.mrb[0].mxu0 %v117
  %v320 = vpop.f32.mrb[0].mxu0
  %v321 = vadd.f32 0.0, %v320
  %v322 = vpop.f32.mrb[0].mxu0
  %v323 = vadd.f32 0.0, %v322
  %324 = vdwg.mxu0
  %325 = vmatprep.subr.mxu0 %v121
  %326 = vmatpush1.msra.mxu0 %v120
  %327 = vmatprep.subr.mxu0 %v128
  %328 = vmatpush1.msra.mxu0 %v127
  %329 = vmatprep.subr.mxu0 %v135
  %330 = vmatpush1.msra.mxu0 %v134
  %331 = vmatprep.subr.mxu0 %v142
  %332 = vmatpush1.msra.mxu0 %v141
  %333 = vmatprep.subr.mxu0 %v149
  %334 = vmatpush1.msra.mxu0 %v148
  %335 = vmatprep.subr.mxu0 %v156
  %336 = vmatpush1.msra.mxu0 %v155
  %337 = vmatprep.subr.mxu0 %v163
  %338 = vmatpush1.msra.mxu0 %v162
  %339 = vmatprep.subr.mxu0 %v170
  %340 = vmatpush1.msra.mxu0 %v169
  %341 = vmatprep.subr.mxu0 %v177
  %342 = vmatpush1.msra.mxu0 %v176
  %343 = vmatprep.subr.mxu0 %v184
  %344 = vmatpush1.msra.mxu0 %v183
  %345 = vmatprep.subr.mxu0 %v191
  %346 = vmatpush1.msra.mxu0 %v190
  %347 = vmatprep.subr.mxu0 %v198
  %348 = vmatpush1.msra.mxu0 %v197
  %349 = vmatprep.subr.mxu0 %v205
  %350 = vmatpush1.msra.mxu0 %v204
  %351 = vmatprep.subr.mxu0 %v212
  %352 = vmatpush1.msra.mxu0 %v211
  %353 = vmatprep.subr.mxu0 %v219
  %354 = vmatpush1.msra.mxu0 %v218
  %355 = vmatprep.subr.mxu0 %v226
  %356 = vmatpush1.msra.mxu0 %v225
  %357 = vmatprep.subr.mxu0 0.0
  %358 = vmatpush1.msra.mxu0 0.0
  %359 = vmatprep.subr.mxu0 0.0
  %360 = vmatpush1.msra.mxu0 0.0
  %361 = vmatprep.subr.mxu0 0.0
  %362 = vmatpush1.msra.mxu0 0.0
  %363 = vmatprep.subr.mxu0 0.0
  %364 = vmatpush1.msra.mxu0 0.0
  %365 = vmatprep.subr.mxu0 0.0
  %366 = vmatpush1.msra.mxu0 0.0
  %367 = vmatprep.subr.mxu0 0.0
  %368 = vmatpush1.msra.mxu0 0.0
  %369 = vmatprep.subr.mxu0 0.0
  %370 = vmatpush1.msra.mxu0 0.0
  %371 = vmatprep.subr.mxu0 0.0
  %372 = vmatpush1.msra.mxu0 0.0
  %373 = vmatprep.subr.mxu0 0.0
  %374 = vmatpush1.msra.mxu0 0.0
  %375 = vmatprep.subr.mxu0 0.0
  %376 = vmatpush1.msra.mxu0 0.0
  %377 = vmatprep.subr.mxu0 0.0
  %378 = vmatpush1.msra.mxu0 0.0
  %379 = vmatprep.subr.mxu0 0.0
  %380 = vmatpush1.msra.mxu0 0.0
  %381 = vmatprep.subr.mxu0 0.0
  %382 = vmatpush1.msra.mxu0 0.0
  %383 = vmatprep.subr.mxu0 0.0
  %384 = vmatpush1.msra.mxu0 0.0
  %385 = vmatprep.subr.mxu0 0.0
  %386 = vmatpush1.msra.mxu0 0.0
  %387 = vmatprep.subr.mxu0 0.0
  %388 = vmatpush1.msra.mxu0 0.0
  %389 = vmatprep.mubr.f32.mxu0 0.0
  %390 = vmatmul.mubr.f32.gmra.mrb[0].mxu0 %v113
  %v391 = vpop.f32.mrb[0].mxu0
  %v392 = vadd.f32 0.0, %v391
  %v393 = vpop.f32.mrb[0].mxu0
  %v394 = vadd.f32 0.0, %v393
  %395 = vmatprep.mubr.f32.mxu0 0.0
  %396 = vmatmul.mubr.f32.gmra.mrb[0].mxu0 %v114
  %v397 = vpop.f32.mrb[0].mxu0
  %v398 = vadd.f32 0.0, %v397
  %v399 = vpop.f32.mrb[0].mxu0
  %v400 = vadd.f32 0.0, %v399
  %401 = vmatprep.mubr.f32.mxu0 0.0
  %402 = vmatmul.mubr.f32.gmra.mrb[0].mxu0 %v115
  %v403 = vpop.f32.mrb[0].mxu0
  %v404 = vadd.f32 0.0, %v403
  %v405 = vpop.f32.mrb[0].mxu0
  %v406 = vadd.f32 0.0, %v405
  %407 = vmatprep.mubr.f32.mxu0 0.0
  %408 = vmatmul.mubr.f32.gmra.mrb[0].mxu0 %v116
  %v409 = vpop.f32.mrb[0].mxu0
  %v410 = vadd.f32 0.0, %v409
  %v411 = vpop.f32.mrb[0].mxu0
  %v412 = vadd.f32 0.0, %v411
  %413 = vmatprep.mubr.f32.mxu0 0.0
  %414 = vmatmul.mubr.f32.gmra.mrb[0].mxu0 %v117
  %v415 = vpop.f32.mrb[0].mxu0
  %v416 = vadd.f32 0.0, %v415
  %v417 = vpop.f32.mrb[0].mxu0
  %v418 = vadd.f32 0.0, %v417
  %419 = vdwg.mxu0
  %420 = vmatprep.subr.mxu0 %v123
  %421 = vmatpush1.msra.mxu0 %v122
  %422 = vmatprep.subr.mxu0 %v130
  %423 = vmatpush1.msra.mxu0 %v129
  %424 = vmatprep.subr.mxu0 %v137
  %425 = vmatpush1.msra.mxu0 %v136
  %426 = vmatprep.subr.mxu0 %v144
  %427 = vmatpush1.msra.mxu0 %v143
  %428 = vmatprep.subr.mxu0 %v151
  %429 = vmatpush1.msra.mxu0 %v150
  %430 = vmatprep.subr.mxu0 %v158
  %431 = vmatpush1.msra.mxu0 %v157
  %432 = vmatprep.subr.mxu0 %v165
  %433 = vmatpush1.msra.mxu0 %v164
  %434 = vmatprep.subr.mxu0 %v172
  %435 = vmatpush1.msra.mxu0 %v171
  %436 = vmatprep.subr.mxu0 %v179
  %437 = vmatpush1.msra.mxu0 %v178
  %438 = vmatprep.subr.mxu0 %v186
  %439 = vmatpush1.msra.mxu0 %v185
  %440 = vmatprep.subr.mxu0 %v193
  %441 = vmatpush1.msra.mxu0 %v192
  %442 = vmatprep.subr.mxu0 %v200
  %443 = vmatpush1.msra.mxu0 %v199
  %444 = vmatprep.subr.mxu0 %v207
  %445 = vmatpush1.msra.mxu0 %v206
  %446 = vmatprep.subr.mxu0 %v214
  %447 = vmatpush1.msra.mxu0 %v213
  %448 = vmatprep.subr.mxu0 %v221
  %449 = vmatpush1.msra.mxu0 %v220
  %450 = vmatprep.subr.mxu0 %v228
  %451 = vmatpush1.msra.mxu0 %v227
  %452 = vmatprep.subr.mxu0 0.0
  %453 = vmatpush1.msra.mxu0 0.0
  %454 = vmatprep.subr.mxu0 0.0
  %455 = vmatpush1.msra.mxu0 0.0
  %456 = vmatprep.subr.mxu0 0.0
  %457 = vmatpush1.msra.mxu0 0.0
  %458 = vmatprep.subr.mxu0 0.0
  %459 = vmatpush1.msra.mxu0 0.0
  %460 = vmatprep.subr.mxu0 0.0
  %461 = vmatpush1.msra.mxu0 0.0
  %462 = vmatprep.subr.mxu0 0.0
  %463 = vmatpush1.msra.mxu0 0.0
  %464 = vmatprep.subr.mxu0 0.0
  %465 = vmatpush1.msra.mxu0 0.0
  %466 = vmatprep.subr.mxu0 0.0
  %467 = vmatpush1.msra.mxu0 0.0
  %468 = vmatprep.subr.mxu0 0.0
  %469 = vmatpush1.msra.mxu0 0.0
  %470 = vmatprep.subr.mxu0 0.0
  %471 = vmatpush1.msra.mxu0 0.0
  %472 = vmatprep.subr.mxu0 0.0
  %473 = vmatpush1.msra.mxu0 0.0
  %474 = vmatprep.subr.mxu0 0.0
  %475 = vmatpush1.msra.mxu0 0.0
  %476 = vmatprep.subr.mxu0 0.0
  %477 = vmatpush1.msra.mxu0 0.0
  %478 = vmatprep.subr.mxu0 0.0
  %479 = vmatpush1.msra.mxu0 0.0
  %480 = vmatprep.subr.mxu0 0.0
  %481 = vmatpush1.msra.mxu0 0.0
  %482 = vmatprep.subr.mxu0 0.0
  %483 = vmatpush1.msra.mxu0 0.0
  %484 = vmatprep.mubr.f32.mxu0 0.0
  %485 = vmatmul.mubr.f32.gmra.mrb[0].mxu0 %v113
  %v486 = vpop.f32.mrb[0].mxu0
  %v487 = vadd.f32 0.0, %v486
  %v488 = vpop.f32.mrb[0].mxu0
  %v489 = vadd.f32 0.0, %v488
  %490 = vmatprep.mubr.f32.mxu0 0.0
  %491 = vmatmul.mubr.f32.gmra.mrb[0].mxu0 %v114
  %v492 = vpop.f32.mrb[0].mxu0
  %v493 = vadd.f32 0.0, %v492
  %v494 = vpop.f32.mrb[0].mxu0
  %v495 = vadd.f32 0.0, %v494
  %496 = vmatprep.mubr.f32.mxu0 0.0
  %497 = vmatmul.mubr.f32.gmra.mrb[0].mxu0 %v115
  %v498 = vpop.f32.mrb[0].mxu0
  %v499 = vadd.f32 0.0, %v498
  %v500 = vpop.f32.mrb[0].mxu0
  %v501 = vadd.f32 0.0, %v500
  %502 = vmatprep.mubr.f32.mxu0 0.0
  %503 = vmatmul.mubr.f32.gmra.mrb[0].mxu0 %v116
  %v504 = vpop.f32.mrb[0].mxu0
  %v505 = vadd.f32 0.0, %v504
  %v506 = vpop.f32.mrb[0].mxu0
  %v507 = vadd.f32 0.0, %v506
  %508 = vmatprep.mubr.f32.mxu0 0.0
  %509 = vmatmul.mubr.f32.gmra.mrb[0].mxu0 %v117
  %v510 = vpop.f32.mrb[0].mxu0
  %v511 = vadd.f32 0.0, %v510
  %v512 = vpop.f32.mrb[0].mxu0
  %v513 = vadd.f32 0.0, %v512
  %514 = vdwg.mxu0
  %515 = vmatprep.subr.mxu0 0.0
  %516 = vmatpush1.msra.mxu0 %v124
  %517 = vmatprep.subr.mxu0 0.0
  %518 = vmatpush1.msra.mxu0 %v131
  %519 = vmatprep.subr.mxu0 0.0
  %520 = vmatpush1.msra.mxu0 %v138
  %521 = vmatprep.subr.mxu0 0.0
  %522 = vmatpush1.msra.mxu0 %v145
  %523 = vmatprep.subr.mxu0 0.0
  %524 = vmatpush1.msra.mxu0 %v152
  %525 = vmatprep.subr.mxu0 0.0
  %526 = vmatpush1.msra.mxu0 %v159
  %527 = vmatprep.subr.mxu0 0.0
  %528 = vmatpush1.msra.mxu0 %v166
  %529 = vmatprep.subr.mxu0 0.0
  %530 = vmatpush1.msra.mxu0 %v173
  %531 = vmatprep.subr.mxu0 0.0
  %532 = vmatpush1.msra.mxu0 %v180
  %533 = vmatprep.subr.mxu0 0.0
  %534 = vmatpush1.msra.mxu0 %v187
  %535 = vmatprep.subr.mxu0 0.0
  %536 = vmatpush1.msra.mxu0 %v194
  %537 = vmatprep.subr.mxu0 0.0
  %538 = vmatpush1.msra.mxu0 %v201
  %539 = vmatprep.subr.mxu0 0.0
  %540 = vmatpush1.msra.mxu0 %v208
  %541 = vmatprep.subr.mxu0 0.0
  %542 = vmatpush1.msra.mxu0 %v215
  %543 = vmatprep.subr.mxu0 0.0
  %544 = vmatpush1.msra.mxu0 %v222
  %545 = vmatprep.subr.mxu0 0.0
  %546 = vmatpush1.msra.mxu0 %v229
  %547 = vmatprep.subr.mxu0 0.0
  %548 = vmatpush1.msra.mxu0 0.0
  %549 = vmatprep.subr.mxu0 0.0
  %550 = vmatpush1.msra.mxu0 0.0
  %551 = vmatprep.subr.mxu0 0.0
  %552 = vmatpush1.msra.mxu0 0.0
  %553 = vmatprep.subr.mxu0 0.0
  %554 = vmatpush1.msra.mxu0 0.0
  %555 = vmatprep.subr.mxu0 0.0
  %556 = vmatpush1.msra.mxu0 0.0
  %557 = vmatprep.subr.mxu0 0.0
  %558 = vmatpush1.msra.mxu0 0.0
  %559 = vmatprep.subr.mxu0 0.0
  %560 = vmatpush1.msra.mxu0 0.0
  %561 = vmatprep.subr.mxu0 0.0
  %562 = vmatpush1.msra.mxu0 0.0
  %563 = vmatprep.subr.mxu0 0.0
  %564 = vmatpush1.msra.mxu0 0.0
  %565 = vmatprep.subr.mxu0 0.0
  %566 = vmatpush1.msra.mxu0 0.0
  %567 = vmatprep.subr.mxu0 0.0
  %568 = vmatpush1.msra.mxu0 0.0
  %569 = vmatprep.subr.mxu0 0.0
  %570 = vmatpush1.msra.mxu0 0.0
  %571 = vmatprep.subr.mxu0 0.0
  %572 = vmatpush1.msra.mxu0 0.0
  %573 = vmatprep.subr.mxu0 0.0
  %574 = vmatpush1.msra.mxu0 0.0
  %575 = vmatprep.subr.mxu0 0.0
  %576 = vmatpush1.msra.mxu0 0.0
  %577 = vmatprep.subr.mxu0 0.0
  %578 = vmatpush1.msra.mxu0 0.0
  %579 = vmatprep.mubr.f32.mxu0 0.0
  %580 = vmatmul.mubr.f32.gmra.mrb[0].mxu0 %v113
  %v581 = vpop.f32.mrb[0].mxu0
  %v582 = vadd.f32 0.0, %v581
  %v583 = vpop.f32.mrb[0].mxu0
  %584 = vmatprep.mubr.f32.mxu0 0.0
  %585 = vmatmul.mubr.f32.gmra.mrb[0].mxu0 %v114
  %v586 = vpop.f32.mrb[0].mxu0
  %v587 = vadd.f32 0.0, %v586
  %v588 = vpop.f32.mrb[0].mxu0
  %589 = vmatprep.mubr.f32.mxu0 0.0
  %590 = vmatmul.mubr.f32.gmra.mrb[0].mxu0 %v115
  %v591 = vpop.f32.mrb[0].mxu0
  %v592 = vadd.f32 0.0, %v591
  %v593 = vpop.f32.mrb[0].mxu0
  %594 = vmatprep.mubr.f32.mxu0 0.0
  %595 = vmatmul.mubr.f32.gmra.mrb[0].mxu0 %v116
  %v596 = vpop.f32.mrb[0].mxu0
  %v597 = vadd.f32 0.0, %v596
  %v598 = vpop.f32.mrb[0].mxu0
  %599 = vmatprep.mubr.f32.mxu0 0.0
  %600 = vmatmul.mubr.f32.gmra.mrb[0].mxu0 %v117
  %v601 = vpop.f32.mrb[0].mxu0
  %v602 = vadd.f32 0.0, %v601
  %v603 = vpop.f32.mrb[0].mxu0
  %604 = vdwg.mxu0
  %v605 = vadd.f32 %v297, %v299
  %v606 = vadd.f32 %v605, %v392
  %v607 = vadd.f32 %v606, %v394
  %v608 = vadd.f32 %v607, %v487
  %v609 = vadd.f32 %v608, %v489
  %v610 = vadd.f32 %v609, %v582
  %611 = vadd.xlane.f32.xlu0 %v610
  %v612 = vpop.xlane.xlu0 %611
  %v613 = vadd.f32 %v303, %v305
  %v614 = vadd.f32 %v613, %v398
  %v615 = vadd.f32 %v614, %v400
  %v616 = vadd.f32 %v615, %v493
  %v617 = vadd.f32 %v616, %v495
  %v618 = vadd.f32 %v617, %v587
  %619 = vadd.xlane.f32.xlu0 %v618
  %v620 = vpop.xlane.xlu0 %619
  %v621 = vadd.f32 %v309, %v311
  %v622 = vadd.f32 %v621, %v404
  %v623 = vadd.f32 %v622, %v406
  %v624 = vadd.f32 %v623, %v499
  %v625 = vadd.f32 %v624, %v501
  %v626 = vadd.f32 %v625, %v592
  %627 = vadd.xlane.f32.xlu0 %v626
  %v628 = vpop.xlane.xlu0 %627
  %v629 = vadd.f32 %v315, %v317
  %v630 = vadd.f32 %v629, %v410
  %v631 = vadd.f32 %v630, %v412
  %v632 = vadd.f32 %v631, %v505
  %v633 = vadd.f32 %v632, %v507
  %v634 = vadd.f32 %v633, %v597
  %635 = vadd.xlane.f32.xlu0 %v634
  %v636 = vpop.xlane.xlu0 %635
  %v637 = vadd.f32 %v321, %v323
  %v638 = vadd.f32 %v637, %v416
  %v639 = vadd.f32 %v638, %v418
  %v640 = vadd.f32 %v639, %v511
  %v641 = vadd.f32 %v640, %v513
  %v642 = vadd.f32 %v641, %v602
  %643 = vadd.xlane.f32.xlu0 %v642
  %v644 = vpop.xlane.xlu0 %643
  %v645 = vmul.f32 %v297, %v297
  %v646 = vmul.f32 %v299, %v299
  %v647 = vmul.f32 %v392, %v392
  %v648 = vmul.f32 %v394, %v394
  %v649 = vmul.f32 %v487, %v487
  %v650 = vmul.f32 %v489, %v489
  %v651 = vmul.f32 %v582, %v582
  %v652 = vmul.f32 %v303, %v303
  %v653 = vmul.f32 %v305, %v305
  %v654 = vmul.f32 %v398, %v398
  %v655 = vmul.f32 %v400, %v400
  %v656 = vmul.f32 %v493, %v493
  %v657 = vmul.f32 %v495, %v495
  %v658 = vmul.f32 %v587, %v587
  %v659 = vmul.f32 %v309, %v309
  %v660 = vmul.f32 %v311, %v311
  %v661 = vmul.f32 %v404, %v404
  %v662 = vmul.f32 %v406, %v406
  %v663 = vmul.f32 %v499, %v499
  %v664 = vmul.f32 %v501, %v501
  %v665 = vmul.f32 %v592, %v592
  %v666 = vmul.f32 %v315, %v315
  %v667 = vmul.f32 %v317, %v317
  %v668 = vmul.f32 %v410, %v410
  %v669 = vmul.f32 %v412, %v412
  %v670 = vmul.f32 %v505, %v505
  %v671 = vmul.f32 %v507, %v507
  %v672 = vmul.f32 %v597, %v597
  %v673 = vmul.f32 %v321, %v321
  %v674 = vmul.f32 %v323, %v323
  %v675 = vmul.f32 %v416, %v416
  %v676 = vmul.f32 %v418, %v418
  %v677 = vmul.f32 %v511, %v511
  %v678 = vmul.f32 %v513, %v513
  %v679 = vmul.f32 %v602, %v602
  %v680 = vadd.f32 %v645, %v646
  %v681 = vadd.f32 %v680, %v647
  %v682 = vadd.f32 %v681, %v648
  %v683 = vadd.f32 %v682, %v649
  %v684 = vadd.f32 %v683, %v650
  %v685 = vadd.f32 %v684, %v651
  %686 = vadd.xlane.f32.xlu0 %v685
  %v687 = vpop.xlane.xlu0 %686
  %v688 = vadd.f32 %v652, %v653
  %v689 = vadd.f32 %v688, %v654
  %v690 = vadd.f32 %v689, %v655
  %v691 = vadd.f32 %v690, %v656
  %v692 = vadd.f32 %v691, %v657
  %v693 = vadd.f32 %v692, %v658
  %694 = vadd.xlane.f32.xlu0 %v693
  %v695 = vpop.xlane.xlu0 %694
  %v696 = vadd.f32 %v659, %v660
  %v697 = vadd.f32 %v696, %v661
  %v698 = vadd.f32 %v697, %v662
  %v699 = vadd.f32 %v698, %v663
  %v700 = vadd.f32 %v699, %v664
  %v701 = vadd.f32 %v700, %v665
  %702 = vadd.xlane.f32.xlu0 %v701
  %v703 = vpop.xlane.xlu0 %702
  %v704 = vadd.f32 %v666, %v667
  %v705 = vadd.f32 %v704, %v668
  %v706 = vadd.f32 %v705, %v669
  %v707 = vadd.f32 %v706, %v670
  %v708 = vadd.f32 %v707, %v671
  %v709 = vadd.f32 %v708, %v672
  %710 = vadd.xlane.f32.xlu0 %v709
  %v711 = vpop.xlane.xlu0 %710
  %v712 = vadd.f32 %v673, %v674
  %v713 = vadd.f32 %v712, %v675
  %v714 = vadd.f32 %v713, %v676
  %v715 = vadd.f32 %v714, %v677
  %v716 = vadd.f32 %v715, %v678
  %v717 = vadd.f32 %v716, %v679
  %718 = vadd.xlane.f32.xlu0 %v717
  %v719 = vpop.xlane.xlu0 %718
  %v720 = vmul.f32 %v612, 0.0012755102
  %v721 = vmul.f32 %v620, 0.0012755102
  %v722 = vmul.f32 %v628, 0.0012755102
  %v723 = vmul.f32 %v636, 0.0012755102
  %v724 = vmul.f32 %v644, 0.0012755102
  %v725 = vmul.f32 %v687, 0.0012755102
  %v726 = vmul.f32 %v695, 0.0012755102
  %v727 = vmul.f32 %v703, 0.0012755102
  %v728 = vmul.f32 %v711, 0.0012755102
  %v729 = vmul.f32 %v719, 0.0012755102
  %v730 = vmul.f32 %v720, %v720
  %v731 = vmul.f32 %v721, %v721
  %v732 = vmul.f32 %v722, %v722
  %v733 = vmul.f32 %v723, %v723
  %v734 = vmul.f32 %v724, %v724
  %v735 = vsub.f32 %v725, %v730
  %v736 = vsub.f32 %v726, %v731
  %v737 = vsub.f32 %v727, %v732
  %v738 = vsub.f32 %v728, %v733
  %v739 = vsub.f32 %v729, %v734
  %v740 = vld [vmem:[%s0 + $0xb8] sm:$0xff]
  %v741 = vld [vmem:[%s0 + $0xc0] sm:$0xff]
  %v742 = vld [vmem:[%s0 + $0xc8] sm:$0xff]
  %v743 = vld [vmem:[%s0 + $0xd0] sm:$0xff]
  %v744 = vld [vmem:[%s0 + $0xd8] sm:$0xff]
  %v745 = vld [vmem:[%s0 + $0xe0] sm:$0xff]
  %v746 = vld [vmem:[%s0 + $0xe8] sm:$0xff]
  %v747 = vld [vmem:[%s0 + $0xf0] sm:$0xff]
  %v748 = vld [vmem:[%s0 + $0xf8] sm:$0xff]
  %v749 = vld [vmem:[%s0 + $0x100] sm:$0xff]
  %v750 = vadd.f32 %v735, 0.001
  %v751 = vadd.f32 %v736, 0.001
  %v752 = vadd.f32 %v737, 0.001
  %v753 = vadd.f32 %v738, 0.001
  %v754 = vadd.f32 %v739, 0.001
  %v755 = vrsqrt.pop %v750
  %v756 = vrsqrt.pop %v751
  %v757 = vrsqrt.pop %v752
  %v758 = vrsqrt.pop %v753
  %v759 = vrsqrt.pop %v754
  %v760 = vmul.f32 %v755, %v740
  %v761 = vmul.f32 %v756, %v741
  %v762 = vmul.f32 %v757, %v742
  %v763 = vmul.f32 %v758, %v743
  %v764 = vmul.f32 %v759, %v744
  %v765 = vmul.f32 %v720, %v760
  %v766 = vmul.f32 %v721, %v761
  %v767 = vmul.f32 %v722, %v762
  %v768 = vmul.f32 %v723, %v763
  %v769 = vmul.f32 %v724, %v764
  %v770 = vsub.f32 %v745, %v765
  %v771 = vsub.f32 %v746, %v766
  %v772 = vsub.f32 %v747, %v767
  %v773 = vsub.f32 %v748, %v768
  %v774 = vsub.f32 %v749, %v769
  %776 = vset.pattern.permute.xlu0 0
  %777 = vperm.xlu0 %776, %v760
  %v778 = vpop.permute.xlu0 %777
  %781 = vset.pattern.permute.xlu0 0
  %782 = vperm.xlu0 %781, %v761
  %v783 = vpop.permute.xlu0 %782
  %786 = vset.pattern.permute.xlu0 0
  %787 = vperm.xlu0 %786, %v762
  %v788 = vpop.permute.xlu0 %787
  %791 = vset.pattern.permute.xlu0 0
  %792 = vperm.xlu0 %791, %v763
  %v793 = vpop.permute.xlu0 %792
  %796 = vset.pattern.permute.xlu0 0
  %797 = vperm.xlu0 %796, %v764
  %v798 = vpop.permute.xlu0 %797
  %v800 = vmul.f32 %v297, %v778
  %v801 = vmul.f32 %v299, %v778
  %v802 = vmul.f32 %v392, %v778
  %v803 = vmul.f32 %v394, %v778
  %v804 = vmul.f32 %v487, %v778
  %v805 = vmul.f32 %v489, %v778
  %v806 = vmul.f32 %v582, %v778
  %v807 = vmul.f32 %v303, %v783
  %v808 = vmul.f32 %v305, %v783
  %v809 = vmul.f32 %v398, %v783
  %v810 = vmul.f32 %v400, %v783
  %v811 = vmul.f32 %v493, %v783
  %v812 = vmul.f32 %v495, %v783
  %v813 = vmul.f32 %v587, %v783
  %v814 = vmul.f32 %v309, %v788
  %v815 = vmul.f32 %v311, %v788
  %v816 = vmul.f32 %v404, %v788
  %v817 = vmul.f32 %v406, %v788
  %v818 = vmul.f32 %v499, %v788
  %v819 = vmul.f32 %v501, %v788
  %v820 = vmul.f32 %v592, %v788
  %v821 = vmul.f32 %v315, %v793
  %v822 = vmul.f32 %v317, %v793
  %v823 = vmul.f32 %v410, %v793
  %v824 = vmul.f32 %v412, %v793
  %v825 = vmul.f32 %v505, %v793
  %v826 = vmul.f32 %v507, %v793
  %v827 = vmul.f32 %v597, %v793
  %v828 = vmul.f32 %v321, %v798
  %v829 = vmul.f32 %v323, %v798
  %v830 = vmul.f32 %v416, %v798
  %v831 = vmul.f32 %v418, %v798
  %v832 = vmul.f32 %v511, %v798
  %v833 = vmul.f32 %v513, %v798
  %v834 = vmul.f32 %v602, %v798
  %836 = vset.pattern.permute.xlu0 0
  %837 = vperm.xlu0 %836, %v770
  %v838 = vpop.permute.xlu0 %837
  %841 = vset.pattern.permute.xlu0 0
  %842 = vperm.xlu0 %841, %v771
  %v843 = vpop.permute.xlu0 %842
  %846 = vset.pattern.permute.xlu0 0
  %847 = vperm.xlu0 %846, %v772
  %v848 = vpop.permute.xlu0 %847
  %851 = vset.pattern.permute.xlu0 0
  %852 = vperm.xlu0 %851, %v773
  %v853 = vpop.permute.xlu0 %852
  %856 = vset.pattern.permute.xlu0 0
  %857 = vperm.xlu0 %856, %v774
  %v858 = vpop.permute.xlu0 %857
  %v860 = vadd.f32 %v800, %v838
  %v861 = vadd.f32 %v801, %v838
  %v862 = vadd.f32 %v802, %v838
  %v863 = vadd.f32 %v803, %v838
  %v864 = vadd.f32 %v804, %v838
  %v865 = vadd.f32 %v805, %v838
  %v866 = vadd.f32 %v806, %v838
  %v867 = vadd.f32 %v807, %v843
  %v868 = vadd.f32 %v808, %v843
  %v869 = vadd.f32 %v809, %v843
  %v870 = vadd.f32 %v810, %v843
  %v871 = vadd.f32 %v811, %v843
  %v872 = vadd.f32 %v812, %v843
  %v873 = vadd.f32 %v813, %v843
  %v874 = vadd.f32 %v814, %v848
  %v875 = vadd.f32 %v815, %v848
  %v876 = vadd.f32 %v816, %v848
  %v877 = vadd.f32 %v817, %v848
  %v878 = vadd.f32 %v818, %v848
  %v879 = vadd.f32 %v819, %v848
  %v880 = vadd.f32 %v820, %v848
  %v881 = vadd.f32 %v821, %v853
  %v882 = vadd.f32 %v822, %v853
  %v883 = vadd.f32 %v823, %v853
  %v884 = vadd.f32 %v824, %v853
  %v885 = vadd.f32 %v825, %v853
  %v886 = vadd.f32 %v826, %v853
  %v887 = vadd.f32 %v827, %v853
  %v888 = vadd.f32 %v828, %v858
  %v889 = vadd.f32 %v829, %v858
  %v890 = vadd.f32 %v830, %v858
  %v891 = vadd.f32 %v831, %v858
  %v892 = vadd.f32 %v832, %v858
  %v893 = vadd.f32 %v833, %v858
  %v894 = vadd.f32 %v834, %v858
  %895 = vst [vmem:[%s2] sm:$0xff] %v860
  %896 = vst [vmem:[%s2 + $0x8] sm:$0xff] %v861
  %897 = vst [vmem:[%s2 + $0x10] sm:$0xff] %v862
  %898 = vst [vmem:[%s2 + $0x18] sm:$0xff] %v863
  %899 = vst [vmem:[%s2 + $0x20] sm:$0xff] %v864
  %900 = vst [vmem:[%s2 + $0x28] sm:$0xff] %v865
  %901 = vst [vmem:[%s2 + $0x30] sm:$0xff] %v866
  %902 = vst [vmem:[%s2 + $0x38] sm:$0xff] %v867
  %903 = vst [vmem:[%s2 + $0x40] sm:$0xff] %v868
  %904 = vst [vmem:[%s2 + $0x48] sm:$0xff] %v869
  %905 = vst [vmem:[%s2 + $0x50] sm:$0xff] %v870
  %906 = vst [vmem:[%s2 + $0x58] sm:$0xff] %v871
  %907 = vst [vmem:[%s2 + $0x60] sm:$0xff] %v872
  %908 = vst [vmem:[%s2 + $0x68] sm:$0xff] %v873
  %909 = vst [vmem:[%s2 + $0x70] sm:$0xff] %v874
  %910 = vst [vmem:[%s2 + $0x78] sm:$0xff] %v875
  %911 = vst [vmem:[%s2 + $0x80] sm:$0xff] %v876
  %912 = vst [vmem:[%s2 + $0x88] sm:$0xff] %v877
  %913 = vst [vmem:[%s2 + $0x90] sm:$0xff] %v878
  %914 = vst [vmem:[%s2 + $0x98] sm:$0xff] %v879
  %915 = vst [vmem:[%s2 + $0xa0] sm:$0xff] %v880
  %916 = vst [vmem:[%s2 + $0xa8] sm:$0xff] %v881
  %917 = vst [vmem:[%s2 + $0xb0] sm:$0xff] %v882
  %918 = vst [vmem:[%s2 + $0xb8] sm:$0xff] %v883
  %919 = vst [vmem:[%s2 + $0xc0] sm:$0xff] %v884
  %920 = vst [vmem:[%s2 + $0xc8] sm:$0xff] %v885
  %921 = vst [vmem:[%s2 + $0xd0] sm:$0xff] %v886
  %922 = vst [vmem:[%s2 + $0xd8] sm:$0xff] %v887
  %923 = vst [vmem:[%s2 + $0xe0] sm:$0xff] %v888
  %924 = vst [vmem:[%s2 + $0xe8] sm:$0xff] %v889
  %925 = vst [vmem:[%s2 + $0xf0] sm:$0xff] %v890
  %926 = vst [vmem:[%s2 + $0xf8] sm:$0xff] %v891
  %927 = vst [vmem:[%s2 + $0x100] sm:$0xff] %v892
  %928 = vst [vmem:[%s2 + $0x108] sm:$0xff] %v893
  %929 = vst [vmem:[%s2 + $0x110] sm:$0xff] %v894
  // Predicated region
  $region10: #{fused_forward.1} parent=0 // pred_check
    _
  $region11: #{fused_forward.1} parent=0 // pred_check_branch
    %931 = sbr.rel (0) target = $region13
  $region12: #{fused_forward.1} parent=0 // pred_region
    _
  $region13: #{fused_forward.1} parent=0 // pred_fallthru
    _
  // Predicated region
  $region14: #{fused_forward.1} parent=0 // pred_check
    _
  $region15: #{fused_forward.1} parent=0 // pred_check_branch
    %933 = sbr.rel (0) target = $region17
  $region16: #{fused_forward.1} parent=0 // pred_region
    _
  $region17: #{fused_forward.1} parent=0 // pred_fallthru
    _

</llo_original>
